<compile_context>
chip_gen: v7x
topology: tpu7x:2x2x1
jax: 0.10.0
libtpu: 0.0.40
codegen_flags: <defaults>
</compile_context>

<pallas_src>
import jax
import jax.numpy as jnp
from jax.experimental import pallas as pl
from jax.experimental.pallas import tpu as pltpu


def pacman_mlp_kernel(xt_ref, w1_ref, b1_ref, w2_ref, b2_ref, w3_ref, b3_ref,
                      out_ref):
    xt = xt_ref[...]                                            # [8, TILE_B] f32 (row 7 is zero pad)

    # fc1 + ReLU:  [16,8] @ [8,TILE_B] -> [16,TILE_B]
    h1 = jnp.dot(w1_ref[...], xt, preferred_element_type=jnp.float32)
    h1 = jnp.maximum(h1 + b1_ref[...], 0.0)

    # fc2 + ReLU:  [32,16] @ [16,TILE_B] -> [32,TILE_B]
    h2 = jnp.dot(w2_ref[...], h1, preferred_element_type=jnp.float32)
    h2 = jnp.maximum(h2 + b2_ref[...], 0.0)

    # fc3 (no activation):  [4,32] @ [32,TILE_B] -> [4,TILE_B]
    h3 = jnp.dot(w3_ref[...], h2, preferred_element_type=jnp.float32)
    h3 = h3 + b3_ref[...]

    out_ref[...] = h3.astype(out_ref.dtype)                     # lane-dense store


def _round_up(n, m):
    return ((n + m - 1) // m) * m


def pacman_net_forward(x, params, tile_b=2048):
    """x: [B, 7] float32.  params: PyTorch-layout weights w[out,in], b[out,1]."""
    B, F = x.shape
    assert F == 7
    w1, b1 = params["w1"], params["b1"]     # [16,7], [16,1]
    w2, b2 = params["w2"], params["b2"]     # [32,16], [32,1]
    w3, b3 = params["w3"], params["b3"]     # [4,32],  [4,1]

    # Batch maps to lanes: pad B up to a multiple of the (128-aligned) tile.
    TILE_B = min(tile_b, _round_up(B, 128))
    B_pad = _round_up(B, TILE_B)

    # Pad input features 7 -> 8 (sublane alignment); pad fc1 weight with a zero
    # column so the result is unchanged.
    xT = jnp.pad(x.T, ((0, 1), (0, B_pad - B)))                 # [8, B_pad]
    w1p = jnp.pad(w1, ((0, 0), (0, 1)))                         # [16, 8]

    grid = (B_pad // TILE_B,)

    # Weights / biases: full-array blocks with constant index_map -> they stay
    # VMEM-resident for the whole grid (weight-stationary).
    def resident(a):
        return pl.BlockSpec(a.shape, lambda i: (0,) * a.ndim)

    flops = 2 * B_pad * (8 * 16 + 16 * 32 + 32 * 4)
    bytes_accessed = 4 * (8 * B_pad + 4 * B_pad
                          + 16 * 8 + 32 * 16 + 4 * 32 + 16 + 32 + 4)

    out_t = pl.pallas_call(
        pacman_mlp_kernel,
        out_shape=jax.ShapeDtypeStruct((4, B_pad), jnp.float32),
        grid=grid,
        in_specs=[
            pl.BlockSpec((8, TILE_B), lambda i: (0, i)),        # activations, tiled on batch
            resident(w1p), resident(b1),
            resident(w2), resident(b2),
            resident(w3), resident(b3),
        ],
        out_specs=pl.BlockSpec((4, TILE_B), lambda i: (0, i)),  # lane-dense output
        compiler_params=pltpu.CompilerParams(
            dimension_semantics=("parallel",)),                 # 2 TCs on v7x
        cost_estimate=pl.CostEstimate(
            flops=flops, transcendentals=0, bytes_accessed=bytes_accessed),
    )(xT, w1p, b1, w2, b2, w3, b3)                              # [4, B_pad]

    return out_t[:, :B].T                                       # [B, 4]


def init_params(key):
    """PyTorch nn.Linear init: W[out,in], b[out,1] ~ U(-1/sqrt(fan_in), +1/sqrt(fan_in))."""
    def linear(key, fan_in, fan_out):
        kw, kb = jax.random.split(key)
        bound = 1.0 / jnp.sqrt(fan_in)
        w = jax.random.uniform(kw, (fan_out, fan_in), jnp.float32, -bound, bound)
        b = jax.random.uniform(kb, (fan_out, 1), jnp.float32, -bound, bound)
        return w, b

    k1, k2, k3 = jax.random.split(key, 3)
    w1, b1 = linear(k1, 7, 16)
    w2, b2 = linear(k2, 16, 32)
    w3, b3 = linear(k3, 32, 4)
    return dict(w1=w1, b1=b1, w2=w2, b2=b2, w3=w3, b3=b3)


def reference_forward(x, p):
    h1 = jnp.maximum(x @ p["w1"].T + p["b1"][:, 0], 0.0)
    h2 = jnp.maximum(h1 @ p["w2"].T + p["b2"][:, 0], 0.0)
    return h2 @ p["w3"].T + p["b3"][:, 0]


if __name__ == "__main__":
    key = jax.random.PRNGKey(0)
    kx, kx2, kp = jax.random.split(key, 3)
    params = init_params(kp)

    # Small batch of feature states (single padded tile).
    B = 8
    x = jax.random.normal(kx, (B, 7), jnp.float32)
    out = jax.block_until_ready(pacman_net_forward(x, params))
    ref = reference_forward(x, params)
    assert out.shape == (B, 4)
    assert jnp.allclose(out, ref, atol=1e-5, rtol=1e-5), "mismatch vs reference (B=8)"

    # Exercise the batch-tiled grid (multiple steps + partial last tile).
    B2 = 300
    x2 = jax.random.normal(kx2, (B2, 7), jnp.float32)
    out2 = jax.block_until_ready(pacman_net_forward(x2, params, tile_b=128))
    ref2 = reference_forward(x2, params)
    assert out2.shape == (B2, 4)
    assert jnp.allclose(out2, ref2, atol=1e-5, rtol=1e-5), "mismatch vs reference (B=300)"

    print("KERNEL_OK")
</pallas_src>

<mosaic_0001>
module attributes {stable_mosaic.version = 11 : i64} {
  func.func @pacman_mlp_kernel(%arg0: i32, %arg1: memref<8x128xf32, #tpu.memory_space<vmem>>, %arg2: memref<16x8xf32, #tpu.memory_space<vmem>>, %arg3: memref<16x1xf32, #tpu.memory_space<vmem>>, %arg4: memref<32x16xf32, #tpu.memory_space<vmem>>, %arg5: memref<32x1xf32, #tpu.memory_space<vmem>>, %arg6: memref<4x32xf32, #tpu.memory_space<vmem>>, %arg7: memref<4x1xf32, #tpu.memory_space<vmem>>, %arg8: memref<4x128xf32, #tpu.memory_space<vmem>>) attributes {dimension_semantics = [#tpu.dimension_semantics<parallel>], iteration_bounds = array<i64: 1>, scalar_prefetch = 0 : i64, scratch_operands = 0 : i64, tpu.core_type = #tpu.core_type<tc>, window_params = [{transform_indices = @transform_0, window_bounds = array<i64: 8, 128>}, {pipeline_mode = #tpu.pipeline_mode<synchronous>, transform_indices = @transform_1, window_bounds = array<i64: 16, 8>}, {pipeline_mode = #tpu.pipeline_mode<synchronous>, transform_indices = @transform_2, window_bounds = array<i64: 16, 1>}, {pipeline_mode = #tpu.pipeline_mode<synchronous>, transform_indices = @transform_3, window_bounds = array<i64: 32, 16>}, {pipeline_mode = #tpu.pipeline_mode<synchronous>, transform_indices = @transform_4, window_bounds = array<i64: 32, 1>}, {pipeline_mode = #tpu.pipeline_mode<synchronous>, transform_indices = @transform_5, window_bounds = array<i64: 4, 32>}, {pipeline_mode = #tpu.pipeline_mode<synchronous>, transform_indices = @transform_6, window_bounds = array<i64: 4, 1>}, {transform_indices = @transform_7, window_bounds = array<i64: 4, 128>}]} {
    %c0 = arith.constant 0 : index
    %c0_0 = arith.constant 0 : index
    %0 = vector.load %arg1[%c0, %c0_0] : memref<8x128xf32, #tpu.memory_space<vmem>>, vector<8x128xf32>
    %c0_1 = arith.constant 0 : index
    %c0_2 = arith.constant 0 : index
    %1 = vector.load %arg2[%c0_1, %c0_2] : memref<16x8xf32, #tpu.memory_space<vmem>>, vector<16x8xf32>
    %cst = arith.constant dense<0.000000e+00> : vector<16x128xf32>
    %2 = tpu.matmul %1, %0, %cst {dimension_numbers = #tpu.dot_dimension_numbers<[1], [0], [0], [1], [0, 0, 1, 1], [], []>} : vector<16x8xf32>, vector<8x128xf32>, vector<16x128xf32> -> vector<16x128xf32>
    %c0_3 = arith.constant 0 : index
    %c0_4 = arith.constant 0 : index
    %3 = vector.load %arg3[%c0_3, %c0_4] : memref<16x1xf32, #tpu.memory_space<vmem>>, vector<16x1xf32>
    %4 = vector.broadcast %3 : vector<16x1xf32> to vector<16x128xf32>
    %5 = arith.addf %2, %4 : vector<16x128xf32>
    %cst_5 = arith.constant 0.000000e+00 : f32
    %6 = vector.broadcast %cst_5 : f32 to vector<16x128xf32>
    %7 = arith.maximumf %5, %6 : vector<16x128xf32>
    %c0_6 = arith.constant 0 : index
    %c0_7 = arith.constant 0 : index
    %8 = vector.load %arg4[%c0_6, %c0_7] : memref<32x16xf32, #tpu.memory_space<vmem>>, vector<32x16xf32>
    %cst_8 = arith.constant dense<0.000000e+00> : vector<32x128xf32>
    %9 = tpu.matmul %8, %7, %cst_8 {dimension_numbers = #tpu.dot_dimension_numbers<[1], [0], [0], [1], [0, 0, 1, 1], [], []>} : vector<32x16xf32>, vector<16x128xf32>, vector<32x128xf32> -> vector<32x128xf32>
    %c0_9 = arith.constant 0 : index
    %c0_10 = arith.constant 0 : index
    %10 = vector.load %arg5[%c0_9, %c0_10] : memref<32x1xf32, #tpu.memory_space<vmem>>, vector<32x1xf32>
    %11 = vector.broadcast %10 : vector<32x1xf32> to vector<32x128xf32>
    %12 = arith.addf %9, %11 : vector<32x128xf32>
    %cst_11 = arith.constant 0.000000e+00 : f32
    %13 = vector.broadcast %cst_11 : f32 to vector<32x128xf32>
    %14 = arith.maximumf %12, %13 : vector<32x128xf32>
    %c0_12 = arith.constant 0 : index
    %c0_13 = arith.constant 0 : index
    %15 = vector.load %arg6[%c0_12, %c0_13] : memref<4x32xf32, #tpu.memory_space<vmem>>, vector<4x32xf32>
    %cst_14 = arith.constant dense<0.000000e+00> : vector<4x128xf32>
    %16 = tpu.matmul %15, %14, %cst_14 {dimension_numbers = #tpu.dot_dimension_numbers<[1], [0], [0], [1], [0, 0, 1, 1], [], []>} : vector<4x32xf32>, vector<32x128xf32>, vector<4x128xf32> -> vector<4x128xf32>
    %c0_15 = arith.constant 0 : index
    %c0_16 = arith.constant 0 : index
    %17 = vector.load %arg7[%c0_15, %c0_16] : memref<4x1xf32, #tpu.memory_space<vmem>>, vector<4x1xf32>
    %18 = vector.broadcast %17 : vector<4x1xf32> to vector<4x128xf32>
    %19 = arith.addf %16, %18 : vector<4x128xf32>
    %c0_17 = arith.constant 0 : index
    %c0_18 = arith.constant 0 : index
    %20 = vector.load %arg8[%c0_17, %c0_18] : memref<4x128xf32, #tpu.memory_space<vmem>>, vector<4x128xf32>
    tpu.vector_store %arg8[%c0_17, %c0_18], %19 {strides = array<i32>} : memref<4x128xf32, #tpu.memory_space<vmem>>, vector<4x128xf32>,
    return
  }
  func.func @transform_0(%arg0: i32) -> (i32, i32) {
    %c0_i32 = arith.constant 0 : i32
    %c0_i32_0 = arith.constant 0 : i32
    return %c0_i32, %arg0 : i32, i32
  }
  func.func @transform_1(%arg0: i32) -> (i32, i32) {
    %c0_i32 = arith.constant 0 : i32
    %c0_i32_0 = arith.constant 0 : i32
    %c0_i32_1 = arith.constant 0 : i32
    return %c0_i32, %c0_i32_0 : i32, i32
  }
  func.func @transform_2(%arg0: i32) -> (i32, i32) {
    %c0_i32 = arith.constant 0 : i32
    %c0_i32_0 = arith.constant 0 : i32
    %c0_i32_1 = arith.constant 0 : i32
    return %c0_i32, %c0_i32_0 : i32, i32
  }
  func.func @transform_3(%arg0: i32) -> (i32, i32) {
    %c0_i32 = arith.constant 0 : i32
    %c0_i32_0 = arith.constant 0 : i32
    %c0_i32_1 = arith.constant 0 : i32
    return %c0_i32, %c0_i32_0 : i32, i32
  }
  func.func @transform_4(%arg0: i32) -> (i32, i32) {
    %c0_i32 = arith.constant 0 : i32
    %c0_i32_0 = arith.constant 0 : i32
    %c0_i32_1 = arith.constant 0 : i32
    return %c0_i32, %c0_i32_0 : i32, i32
  }
  func.func @transform_5(%arg0: i32) -> (i32, i32) {
    %c0_i32 = arith.constant 0 : i32
    %c0_i32_0 = arith.constant 0 : i32
    %c0_i32_1 = arith.constant 0 : i32
    return %c0_i32, %c0_i32_0 : i32, i32
  }
  func.func @transform_6(%arg0: i32) -> (i32, i32) {
    %c0_i32 = arith.constant 0 : i32
    %c0_i32_0 = arith.constant 0 : i32
    %c0_i32_1 = arith.constant 0 : i32
    return %c0_i32, %c0_i32_0 : i32, i32
  }
  func.func @transform_7(%arg0: i32) -> (i32, i32) {
    %c0_i32 = arith.constant 0 : i32
    %c0_i32_0 = arith.constant 0 : i32
    return %c0_i32, %arg0 : i32, i32
  }
}

</mosaic_0001>

<llo_original>
// kernel: tpu_custom_call.1
$region0: #{tpu_custom_call.1}
  #allocation0 [shape = 'u32[]', space=smem, size = 0x4, offset = 0x4, fixed_abs, tag = 'smem constant byte address 0x4 - core index']
  #allocation1 [shape = 'u32[144,128]{1,0:T(1,128)}', space=vmem, size = 0x12000, scoped, tag = 'internal scratch']
  %s0 = inlined_call_operand.vmem [shape: f32[8,128], index: 0, kind: input, shape index: {}]
  %s1 = inlined_call_operand.vmem [shape: f32[16,8], index: 1, kind: input, shape index: {}]
  %s2 = inlined_call_operand.vmem [shape: f32[16,1], index: 2, kind: input, shape index: {}]
  %s3 = inlined_call_operand.vmem [shape: f32[32,16], index: 3, kind: input, shape index: {}]
  %s4 = inlined_call_operand.vmem [shape: f32[32,1], index: 4, kind: input, shape index: {}]
  %s5 = inlined_call_operand.vmem [shape: f32[4,32], index: 5, kind: input, shape index: {}]
  %s6 = inlined_call_operand.vmem [shape: f32[4,1], index: 6, kind: input, shape index: {}]
  %s7 = inlined_call_operand.hbm [shape: f32[4,128], index: 7, kind: output, shape index: {}]
  %s8 = sld [smem:[#allocation0]]
  $region38: #{tpu_custom_call.1} parent=0
    _
  %s10 = ssub.s32 1, %s8
  %s11 = scalar_select 0, %s10, %s8
  $region1: #{tpu_custom_call.1} parent=0
    #allocation2 [shape = 'u8[2048]{0}', space=vmem, size = 0x800, scoped, tag = 'output window, operand 0, single buffered']
    #allocation3 [shape = 's32[1]{0}', space=sflag, size = 0x4, scoped, tag = 'scoped memory for tpu_custom_call.1']
    %12 = vsyncpa [#allocation3], 0
    // Predicated region
    $region2: #{tpu_custom_call.1} parent=1 // pred_check
      _
    $region3: #{tpu_custom_call.1} parent=1 // pred_check_branch
      %14 = sbr.rel (0) target = $region5
    $region4: #{tpu_custom_call.1} parent=1 // pred_region
      _
    $region5: #{tpu_custom_call.1} parent=1 // pred_fallthru
      _
    // Predicated region
    $region6: #{tpu_custom_call.1} parent=1 // pred_check
      _
    $region7: #{tpu_custom_call.1} parent=1 // pred_check_branch
      %16 = sbr.rel (0) target = $region9
    $region8: #{tpu_custom_call.1} parent=1 // pred_region
      _
    $region9: #{tpu_custom_call.1} parent=1 // pred_fallthru
      _
    // Predicated region
    $region10: #{tpu_custom_call.1} parent=1 // pred_check
      _
    $region11: #{tpu_custom_call.1} parent=1 // pred_check_branch
      %18 = sbr.rel (0) target = $region13
    $region12: #{tpu_custom_call.1} parent=1 // pred_region
      _
    $region13: #{tpu_custom_call.1} parent=1 // pred_fallthru
      _
    // Predicated region
    $region14: #{tpu_custom_call.1} parent=1 // pred_check
      _
    $region15: #{tpu_custom_call.1} parent=1 // pred_check_branch
      %20 = sbr.rel (0) target = $region17
    $region16: #{tpu_custom_call.1} parent=1 // pred_region
      _
    $region17: #{tpu_custom_call.1} parent=1 // pred_fallthru
      _
    // Predicated region
    $region18: #{tpu_custom_call.1} parent=1 // pred_check
      _
    $region19: #{tpu_custom_call.1} parent=1 // pred_check_branch
      %22 = sbr.rel (0) target = $region21
    $region20: #{tpu_custom_call.1} parent=1 // pred_region
      _
    $region21: #{tpu_custom_call.1} parent=1 // pred_fallthru
      _
    // Predicated region
    $region22: #{tpu_custom_call.1} parent=1 // pred_check
      _
    $region23: #{tpu_custom_call.1} parent=1 // pred_check_branch
      %24 = sbr.rel (0) target = $region25
    $region24: #{tpu_custom_call.1} parent=1 // pred_region
      _
    $region25: #{tpu_custom_call.1} parent=1 // pred_fallthru
      _
    // Predicated region
    $region26: #{tpu_custom_call.1} parent=1 // pred_check
      _
    $region27: #{tpu_custom_call.1} parent=1 // pred_check_branch
      %26 = sbr.rel (0) target = $region29
    $region28: #{tpu_custom_call.1} parent=1 // pred_region
      _
    $region29: #{tpu_custom_call.1} parent=1 // pred_fallthru
      _
    %v27 = vld [vmem:[%s0] sm:$0xff]
    %v28 = vld [vmem:[%s1] sm:$0xff]
    %v29 = vld [vmem:[%s1 + $0x8] sm:$0xff]
    %v30 = vld [vmem:[%s2] sm:$0xff]
    %v31 = vld [vmem:[%s2 + $0x8] sm:$0xff]
    %33 = vset.pattern.permute.xlu0 0
    %34 = vperm.xlu0 %33, %v30
    %v35 = vpop.permute.xlu0 %34
    %38 = vset.pattern.permute.xlu0 0
    %39 = vperm.xlu0 %38, %v31
    %v40 = vpop.permute.xlu0 %39
    %vm42 = vcmask 64512
    %v44 = vsel %vm42, %v28, 0
    %v47 = vsel %vm42, %v29, 0
    %49 = vmatprep.subr.mxu0 0.0
    %50 = vmatpush1.msra.mxu0 %v27
    %51 = vmatprep.subr.mxu0 0.0
    %52 = vmatpush1.msra.mxu0 0.0
    %53 = vmatprep.subr.mxu0 0.0
    %54 = vmatpush1.msra.mxu0 0.0
    %55 = vmatprep.subr.mxu0 0.0
    %56 = vmatpush1.msra.mxu0 0.0
    %57 = vmatprep.subr.mxu0 0.0
    %58 = vmatpush1.msra.mxu0 0.0
    %59 = vmatprep.subr.mxu0 0.0
    %60 = vmatpush1.msra.mxu0 0.0
    %61 = vmatprep.subr.mxu0 0.0
    %62 = vmatpush1.msra.mxu0 0.0
    %63 = vmatprep.subr.mxu0 0.0
    %64 = vmatpush1.msra.mxu0 0.0
    %65 = vmatprep.subr.mxu0 0.0
    %66 = vmatpush1.msra.mxu0 0.0
    %67 = vmatprep.subr.mxu0 0.0
    %68 = vmatpush1.msra.mxu0 0.0
    %69 = vmatprep.subr.mxu0 0.0
    %70 = vmatpush1.msra.mxu0 0.0
    %71 = vmatprep.subr.mxu0 0.0
    %72 = vmatpush1.msra.mxu0 0.0
    %73 = vmatprep.subr.mxu0 0.0
    %74 = vmatpush1.msra.mxu0 0.0
    %75 = vmatprep.subr.mxu0 0.0
    %76 = vmatpush1.msra.mxu0 0.0
    %77 = vmatprep.subr.mxu0 0.0
    %78 = vmatpush1.msra.mxu0 0.0
    %79 = vmatprep.subr.mxu0 0.0
    %80 = vmatpush1.msra.mxu0 0.0
    %81 = vmatprep.subr.mxu0 0.0
    %82 = vmatpush1.msra.mxu0 0.0
    %83 = vmatprep.subr.mxu0 0.0
    %84 = vmatpush1.msra.mxu0 0.0
    %85 = vmatprep.subr.mxu0 0.0
    %86 = vmatpush1.msra.mxu0 0.0
    %87 = vmatprep.subr.mxu0 0.0
    %88 = vmatpush1.msra.mxu0 0.0
    %89 = vmatprep.subr.mxu0 0.0
    %90 = vmatpush1.msra.mxu0 0.0
    %91 = vmatprep.subr.mxu0 0.0
    %92 = vmatpush1.msra.mxu0 0.0
    %93 = vmatprep.subr.mxu0 0.0
    %94 = vmatpush1.msra.mxu0 0.0
    %95 = vmatprep.subr.mxu0 0.0
    %96 = vmatpush1.msra.mxu0 0.0
    %97 = vmatprep.subr.mxu0 0.0
    %98 = vmatpush1.msra.mxu0 0.0
    %99 = vmatprep.subr.mxu0 0.0
    %100 = vmatpush1.msra.mxu0 0.0
    %101 = vmatprep.subr.mxu0 0.0
    %102 = vmatpush1.msra.mxu0 0.0
    %103 = vmatprep.subr.mxu0 0.0
    %104 = vmatpush1.msra.mxu0 0.0
    %105 = vmatprep.subr.mxu0 0.0
    %106 = vmatpush1.msra.mxu0 0.0
    %107 = vmatprep.subr.mxu0 0.0
    %108 = vmatpush1.msra.mxu0 0.0
    %109 = vmatprep.subr.mxu0 0.0
    %110 = vmatpush1.msra.mxu0 0.0
    %111 = vmatprep.subr.mxu0 0.0
    %112 = vmatpush1.msra.mxu0 0.0
    %113 = vmatprep.mubr.f32.mxu0 0.0
    %114 = vmatmul.mubr.f32.gmra.mrb[0].mxu0 %v44
    %v115 = vpop.f32.mrb[0].mxu0
    %v116 = vadd.f32 %v35, %v115
    %v117 = vpop.f32.mrb[0].mxu0
    %118 = vmatprep.mubr.f32.mxu0 0.0
    %119 = vmatmul.mubr.f32.gmra.mrb[0].mxu0 %v47
    %v120 = vpop.f32.mrb[0].mxu0
    %v121 = vadd.f32 %v40, %v120
    %v122 = vpop.f32.mrb[0].mxu0
    %123 = vdwg.mxu0
    %v124 = vmax.f32 %v116, 0.0
    %v125 = vmax.f32 %v121, 0.0
    %v126 = vld [vmem:[%s3] sm:$0xff]
    %v127 = vld [vmem:[%s3 + $0x8] sm:$0xff]
    %v128 = vld [vmem:[%s3 + $0x10] sm:$0xff]
    %v129 = vld [vmem:[%s3 + $0x18] sm:$0xff]
    %v130 = vld [vmem:[%s4] sm:$0xff]
    %v131 = vld [vmem:[%s4 + $0x8] sm:$0xff]
    %v132 = vld [vmem:[%s4 + $0x10] sm:$0xff]
    %v133 = vld [vmem:[%s4 + $0x18] sm:$0xff]
    %135 = vset.pattern.permute.xlu0 0
    %136 = vperm.xlu0 %135, %v130
    %v137 = vpop.permute.xlu0 %136
    %140 = vset.pattern.permute.xlu0 0
    %141 = vperm.xlu0 %140, %v131
    %v142 = vpop.permute.xlu0 %141
    %145 = vset.pattern.permute.xlu0 0
    %146 = vperm.xlu0 %145, %v132
    %v147 = vpop.permute.xlu0 %146
    %150 = vset.pattern.permute.xlu0 0
    %151 = vperm.xlu0 %150, %v133
    %v152 = vpop.permute.xlu0 %151
    %vm154 = vcmask 130048
    %v156 = vsel %vm154, %v126, 0
    %v159 = vsel %vm154, %v127, 0
    %v162 = vsel %vm154, %v128, 0
    %v165 = vsel %vm154, %v129, 0
    %167 = vmatprep.subr.mxu0 0.0
    %168 = vmatpush1.msra.mxu0 %v124
    %169 = vmatprep.subr.mxu0 0.0
    %170 = vmatpush1.msra.mxu0 %v125
    %171 = vmatprep.subr.mxu0 0.0
    %172 = vmatpush1.msra.mxu0 0.0
    %173 = vmatprep.subr.mxu0 0.0
    %174 = vmatpush1.msra.mxu0 0.0
    %175 = vmatprep.subr.mxu0 0.0
    %176 = vmatpush1.msra.mxu0 0.0
    %177 = vmatprep.subr.mxu0 0.0
    %178 = vmatpush1.msra.mxu0 0.0
    %179 = vmatprep.subr.mxu0 0.0
    %180 = vmatpush1.msra.mxu0 0.0
    %181 = vmatprep.subr.mxu0 0.0
    %182 = vmatpush1.msra.mxu0 0.0
    %183 = vmatprep.subr.mxu0 0.0
    %184 = vmatpush1.msra.mxu0 0.0
    %185 = vmatprep.subr.mxu0 0.0
    %186 = vmatpush1.msra.mxu0 0.0
    %187 = vmatprep.subr.mxu0 0.0
    %188 = vmatpush1.msra.mxu0 0.0
    %189 = vmatprep.subr.mxu0 0.0
    %190 = vmatpush1.msra.mxu0 0.0
    %191 = vmatprep.subr.mxu0 0.0
    %192 = vmatpush1.msra.mxu0 0.0
    %193 = vmatprep.subr.mxu0 0.0
    %194 = vmatpush1.msra.mxu0 0.0
    %195 = vmatprep.subr.mxu0 0.0
    %196 = vmatpush1.msra.mxu0 0.0
    %197 = vmatprep.subr.mxu0 0.0
    %198 = vmatpush1.msra.mxu0 0.0
    %199 = vmatprep.subr.mxu0 0.0
    %200 = vmatpush1.msra.mxu0 0.0
    %201 = vmatprep.subr.mxu0 0.0
    %202 = vmatpush1.msra.mxu0 0.0
    %203 = vmatprep.subr.mxu0 0.0
    %204 = vmatpush1.msra.mxu0 0.0
    %205 = vmatprep.subr.mxu0 0.0
    %206 = vmatpush1.msra.mxu0 0.0
    %207 = vmatprep.subr.mxu0 0.0
    %208 = vmatpush1.msra.mxu0 0.0
    %209 = vmatprep.subr.mxu0 0.0
    %210 = vmatpush1.msra.mxu0 0.0
    %211 = vmatprep.subr.mxu0 0.0
    %212 = vmatpush1.msra.mxu0 0.0
    %213 = vmatprep.subr.mxu0 0.0
    %214 = vmatpush1.msra.mxu0 0.0
    %215 = vmatprep.subr.mxu0 0.0
    %216 = vmatpush1.msra.mxu0 0.0
    %217 = vmatprep.subr.mxu0 0.0
    %218 = vmatpush1.msra.mxu0 0.0
    %219 = vmatprep.subr.mxu0 0.0
    %220 = vmatpush1.msra.mxu0 0.0
    %221 = vmatprep.subr.mxu0 0.0
    %222 = vmatpush1.msra.mxu0 0.0
    %223 = vmatprep.subr.mxu0 0.0
    %224 = vmatpush1.msra.mxu0 0.0
    %225 = vmatprep.subr.mxu0 0.0
    %226 = vmatpush1.msra.mxu0 0.0
    %227 = vmatprep.subr.mxu0 0.0
    %228 = vmatpush1.msra.mxu0 0.0
    %229 = vmatprep.subr.mxu0 0.0
    %230 = vmatpush1.msra.mxu0 0.0
    %231 = vmatprep.mubr.f32.mxu0 0.0
    %232 = vmatmul.mubr.f32.gmra.mrb[0].mxu0 %v156
    %v233 = vpop.f32.mrb[0].mxu0
    %v234 = vadd.f32 %v137, %v233
    %v235 = vpop.f32.mrb[0].mxu0
    %236 = vmatprep.mubr.f32.mxu0 0.0
    %237 = vmatmul.mubr.f32.gmra.mrb[0].mxu0 %v159
    %v238 = vpop.f32.mrb[0].mxu0
    %v239 = vadd.f32 %v142, %v238
    %v240 = vpop.f32.mrb[0].mxu0
    %241 = vmatprep.mubr.f32.mxu0 0.0
    %242 = vmatmul.mubr.f32.gmra.mrb[0].mxu0 %v162
    %v243 = vpop.f32.mrb[0].mxu0
    %v244 = vadd.f32 %v147, %v243
    %v245 = vpop.f32.mrb[0].mxu0
    %246 = vmatprep.mubr.f32.mxu0 0.0
    %247 = vmatmul.mubr.f32.gmra.mrb[0].mxu0 %v165
    %v248 = vpop.f32.mrb[0].mxu0
    %v249 = vadd.f32 %v152, %v248
    %v250 = vpop.f32.mrb[0].mxu0
    %251 = vdwg.mxu0
    %v252 = vmax.f32 %v234, 0.0
    %v253 = vmax.f32 %v239, 0.0
    %v254 = vmax.f32 %v244, 0.0
    %v255 = vmax.f32 %v249, 0.0
    %v256 = vld [vmem:[%s5] sm:$0xf]
    %v257 = vld [vmem:[%s6] sm:$0xf]
    %259 = vset.pattern.permute.xlu0 0
    %260 = vperm.xlu0 %259, %v257
    %v261 = vpop.permute.xlu0 %260
    %vm263 = vcmask 261120
    %v265 = vsel %vm263, %v256, 0
    %267 = vmatprep.subr.mxu0 0.0
    %268 = vmatpush1.msra.mxu0 %v252
    %269 = vmatprep.subr.mxu0 0.0
    %270 = vmatpush1.msra.mxu0 %v253
    %271 = vmatprep.subr.mxu0 0.0
    %272 = vmatpush1.msra.mxu0 %v254
    %273 = vmatprep.subr.mxu0 0.0
    %274 = vmatpush1.msra.mxu0 %v255
    %275 = vmatprep.subr.mxu0 0.0
    %276 = vmatpush1.msra.mxu0 0.0
    %277 = vmatprep.subr.mxu0 0.0
    %278 = vmatpush1.msra.mxu0 0.0
    %279 = vmatprep.subr.mxu0 0.0
    %280 = vmatpush1.msra.mxu0 0.0
    %281 = vmatprep.subr.mxu0 0.0
    %282 = vmatpush1.msra.mxu0 0.0
    %283 = vmatprep.subr.mxu0 0.0
    %284 = vmatpush1.msra.mxu0 0.0
    %285 = vmatprep.subr.mxu0 0.0
    %286 = vmatpush1.msra.mxu0 0.0
    %287 = vmatprep.subr.mxu0 0.0
    %288 = vmatpush1.msra.mxu0 0.0
    %289 = vmatprep.subr.mxu0 0.0
    %290 = vmatpush1.msra.mxu0 0.0
    %291 = vmatprep.subr.mxu0 0.0
    %292 = vmatpush1.msra.mxu0 0.0
    %293 = vmatprep.subr.mxu0 0.0
    %294 = vmatpush1.msra.mxu0 0.0
    %295 = vmatprep.subr.mxu0 0.0
    %296 = vmatpush1.msra.mxu0 0.0
    %297 = vmatprep.subr.mxu0 0.0
    %298 = vmatpush1.msra.mxu0 0.0
    %299 = vmatprep.subr.mxu0 0.0
    %300 = vmatpush1.msra.mxu0 0.0
    %301 = vmatprep.subr.mxu0 0.0
    %302 = vmatpush1.msra.mxu0 0.0
    %303 = vmatprep.subr.mxu0 0.0
    %304 = vmatpush1.msra.mxu0 0.0
    %305 = vmatprep.subr.mxu0 0.0
    %306 = vmatpush1.msra.mxu0 0.0
    %307 = vmatprep.subr.mxu0 0.0
    %308 = vmatpush1.msra.mxu0 0.0
    %309 = vmatprep.subr.mxu0 0.0
    %310 = vmatpush1.msra.mxu0 0.0
    %311 = vmatprep.subr.mxu0 0.0
    %312 = vmatpush1.msra.mxu0 0.0
    %313 = vmatprep.subr.mxu0 0.0
    %314 = vmatpush1.msra.mxu0 0.0
    %315 = vmatprep.subr.mxu0 0.0
    %316 = vmatpush1.msra.mxu0 0.0
    %317 = vmatprep.subr.mxu0 0.0
    %318 = vmatpush1.msra.mxu0 0.0
    %319 = vmatprep.subr.mxu0 0.0
    %320 = vmatpush1.msra.mxu0 0.0
    %321 = vmatprep.subr.mxu0 0.0
    %322 = vmatpush1.msra.mxu0 0.0
    %323 = vmatprep.subr.mxu0 0.0
    %324 = vmatpush1.msra.mxu0 0.0
    %325 = vmatprep.subr.mxu0 0.0
    %326 = vmatpush1.msra.mxu0 0.0
    %327 = vmatprep.subr.mxu0 0.0
    %328 = vmatpush1.msra.mxu0 0.0
    %329 = vmatprep.subr.mxu0 0.0
    %330 = vmatpush1.msra.mxu0 0.0
    %331 = vmatprep.mubr.f32.mxu0 0.0
    %332 = vmatmul.mubr.f32.gmra.mrb[0].mxu0 %v265
    %v333 = vpop.f32.mrb[0].mxu0
    %v334 = vadd.f32 %v261, %v333
    %v335 = vpop.f32.mrb[0].mxu0
    %336 = vdwg.mxu0
    %337 = vst [vmem:[#allocation2] sm:$0xf] %v334
    // Predicated region
    $region30: #{tpu_custom_call.1} parent=1 // pred_check
      _
    $region31: #{tpu_custom_call.1} parent=1 // pred_check_branch
      %339 = sbr.rel (0) target = $region33
    $region32: #{tpu_custom_call.1} parent=1 // pred_region
      %s341 = ssub.s32 64, 64
      %342 = vsyncadd [#allocation3], %s341
      %s344 = sshll.u32 [#allocation2], 4
      %s345 = int_to_ptr.vmem [resolvable:$true] %s344
      %347 = dma.vmem_to_hbm [thread:$0]  %s345, 64, %s7, [#allocation3]
    $region33: #{tpu_custom_call.1} parent=1 // pred_fallthru
      _
    // Predicated region
    $region34: #{tpu_custom_call.1} parent=1 // pred_check
      _
    $region35: #{tpu_custom_call.1} parent=1 // pred_check_branch
      %349 = sbr.rel (0) target = $region37
    $region36: #{tpu_custom_call.1} parent=1 // pred_region
      %350 = dma.done [#allocation3], 64
    $region37: #{tpu_custom_call.1} parent=1 // pred_fallthru
      _
    %351 = vsyncpa [#allocation3], 1

</llo_original>
